<compile_context>
chip_gen: v6e
topology: v6e:2x2x1
jax: 0.10.0
libtpu: 0.0.40
codegen_flags: <defaults>
</compile_context>

<pallas_src>
import functools

import jax
import jax.numpy as jnp
from jax.experimental import pallas as pl
from jax.experimental.pallas import tpu as pltpu

_LANE = 128
_VMEM_BUDGET = None


def _vmem_budget_bytes():
    """70% of the chip's VMEM; fall back to 64 MiB (v7x per-TC) if unqueryable."""
    global _VMEM_BUDGET
    if _VMEM_BUDGET is None:
        cap = 64 * 1024 * 1024
        try:
            info = pltpu.get_tpu_info()
            cap = int(getattr(info, "vmem_capacity_bytes", cap) or cap)
        except Exception:
            pass
        _VMEM_BUDGET = int(cap * 0.7)
    return _VMEM_BUDGET


# ----------------------------- shared helpers ---------------------------------


def _masked_log_softmax(z, num_valid):
    """Row-wise log_softmax over the first `num_valid` lanes (rest -> -inf)."""
    cols = jax.lax.broadcasted_iota(jnp.int32, z.shape, dimension=1)
    z = jnp.where(cols < num_valid, z, -jnp.inf)
    m = jnp.max(z, axis=1, keepdims=True)
    lse = jnp.log(jnp.sum(jnp.exp(z - m), axis=1, keepdims=True)) + m
    return z - lse


def _pad_params(w1, b1, w2, b2):
    """Zero-pad hidden and class dims to 128 lanes; bf16 weights, f32 biases."""
    din, hidden = w1.shape
    o = w2.shape[1]
    h_pad = ((hidden + _LANE - 1) // _LANE) * _LANE
    o_pad = ((o + _LANE - 1) // _LANE) * _LANE
    w1p = jnp.pad(w1.astype(jnp.bfloat16), ((0, 0), (0, h_pad - hidden)))
    b1p = jnp.pad(b1.astype(jnp.float32).reshape(1, -1), ((0, 0), (0, h_pad - hidden)))
    w2p = jnp.pad(w2.astype(jnp.bfloat16), ((0, h_pad - hidden), (0, o_pad - o)))
    b2p = jnp.pad(b2.astype(jnp.float32).reshape(1, -1), ((0, 0), (0, o_pad - o)))
    return w1p, b1p, w2p, b2p, h_pad, o_pad


def _row_tile(n, target=512):
    """Largest multiple-of-8 divisor of n <= target, preferring >=2 row tiles."""
    cap = min(target, n)
    if n >= 16:
        cap = min(cap, n // 2)  # leave >=2 tiles so both v7x TensorCores get work
    best = 0
    t = 8
    while t <= cap:
        if n % t == 0:
            best = t
        t += 8
    return best if best > 0 else n


def _k_tile(n, target=2048):
    """Largest multiple-of-128 divisor of n <= target (else the full dim)."""
    cap = min(target, n)
    best = 0
    t = 128
    while t <= cap:
        if n % t == 0:
            best = t
        t += 128
    return best if best > 0 else n


# ----------------------------- fully fused kernel (small N) -------------------


def _make_fused_kernel(num_classes):
    def kernel(a_ref, x_ref, w1_ref, b1_ref, w2_ref, b2_ref, o_ref):
        # layer 1: H = ReLU(A_hat @ (X @ W1) + b1)        (f32 accumulation)
        xw1 = jnp.dot(x_ref[...], w1_ref[...], preferred_element_type=jnp.float32)
        z1 = jnp.dot(a_ref[...], xw1.astype(jnp.bfloat16),
                     preferred_element_type=jnp.float32)
        h = jnp.maximum(z1 + b1_ref[...], 0.0)
        # dropout(p=0.5) is identity in eval mode.
        # TODO(synk): wire pltpu.prng_seed/prng_random_bits for training dropout.
        # layer 2: log_softmax(A_hat @ (H @ W2) + b2)
        hw2 = jnp.dot(h.astype(jnp.bfloat16), w2_ref[...],
                      preferred_element_type=jnp.float32)
        z2 = jnp.dot(a_ref[...], hw2.astype(jnp.bfloat16),
                     preferred_element_type=jnp.float32) + b2_ref[...]
        o_ref[...] = _masked_log_softmax(z2, num_classes)

    return kernel


def _forward_fused(a_bf, x_bf, w1p, b1p, w2p, b2p, num_classes, vmem):
    n = a_bf.shape[0]
    o_pad = w2p.shape[1]
    vspec = pl.BlockSpec(memory_space=pltpu.MemorySpace.VMEM)
    return pl.pallas_call(
        _make_fused_kernel(num_classes),
        out_shape=jax.ShapeDtypeStruct((n, o_pad), jnp.float32),
        in_specs=[vspec] * 6,
        out_specs=vspec,
        compiler_params=pltpu.CompilerParams(vmem_limit_bytes=vmem),
    )(a_bf, x_bf, w1p, b1p, w2p, b2p)


# ----------------------------- tiled kernels (large N) ------------------------


def _linear_kernel(x_ref, w_ref, o_ref):
    """One row tile of X @ W (bf16 operands, f32 accumulate, bf16 store)."""
    o_ref[...] = jnp.dot(
        x_ref[...], w_ref[...], preferred_element_type=jnp.float32
    ).astype(o_ref.dtype)


def _linear(x_bf, w_bf, tm, vmem):
    n, din = x_bf.shape
    h = w_bf.shape[1]
    return pl.pallas_call(
        _linear_kernel,
        out_shape=jax.ShapeDtypeStruct((n, h), jnp.bfloat16),
        grid=(n // tm,),
        in_specs=[
            pl.BlockSpec((tm, din), lambda i: (i, 0)),
            pl.BlockSpec((din, h), lambda i: (0, 0)),
        ],
        out_specs=pl.BlockSpec((tm, h), lambda i: (i, 0)),
        compiler_params=pltpu.CompilerParams(
            dimension_semantics=("parallel",), vmem_limit_bytes=vmem
        ),
    )(x_bf, w_bf)


def _make_layer1_agg_kernel(tk, xw_resident):
    """A_hat @ XW (k-tiled, f32 acc) fused with bias + ReLU + (@ W2) on last k."""

    def kernel(a_ref, xw_ref, b1_ref, w2_ref, o_ref, acc_ref):
        k = pl.program_id(1)

        @pl.when(k == 0)
        def _():
            acc_ref[...] = jnp.zeros_like(acc_ref)

        if xw_resident:
            xw = xw_ref[pl.ds(pl.multiple_of(k * tk, tk), tk), :]
        else:
            xw = xw_ref[...]
        acc_ref[...] += jnp.dot(a_ref[...], xw, preferred_element_type=jnp.float32)

        @pl.when(k == pl.num_programs(1) - 1)
        def _():
            h = jnp.maximum(acc_ref[...] + b1_ref[...], 0.0)
            # dropout(p=0.5) identity in eval mode (TODO above).
            o_ref[...] = jnp.dot(
                h.astype(jnp.bfloat16), w2_ref[...],
                preferred_element_type=jnp.float32,
            ).astype(o_ref.dtype)

    return kernel


def _layer1_aggregate(a_bf, xw_bf, b1p, w2p, tm, tk, xw_resident, vmem):
    n = a_bf.shape[0]
    h = xw_bf.shape[1]
    o_pad = w2p.shape[1]
    if xw_resident:
        xw_spec = pl.BlockSpec((n, h), lambda i, k: (0, 0))      # resident, DMA'd once
    else:
        xw_spec = pl.BlockSpec((tk, h), lambda i, k: (k, 0))     # streamed per k tile
    return pl.pallas_call(
        _make_layer1_agg_kernel(tk, xw_resident),
        out_shape=jax.ShapeDtypeStruct((n, o_pad), jnp.bfloat16),
        grid=(n // tm, n // tk),  # reduction axis last
        in_specs=[
            pl.BlockSpec((tm, tk), lambda i, k: (i, k)),
            xw_spec,
            pl.BlockSpec((1, h), lambda i, k: (0, 0)),
            pl.BlockSpec((h, o_pad), lambda i, k: (0, 0)),
        ],
        out_specs=pl.BlockSpec((tm, o_pad), lambda i, k: (i, 0)),
        scratch_shapes=[pltpu.VMEM((tm, h), jnp.float32)],
        compiler_params=pltpu.CompilerParams(
            dimension_semantics=("parallel", "arbitrary"), vmem_limit_bytes=vmem
        ),
    )(a_bf, xw_bf, b1p, w2p)


def _make_layer2_agg_kernel(tk, hw_resident, num_classes):
    """A_hat @ HW2 (k-tiled, f32 acc) fused with bias + masked log_softmax."""

    def kernel(a_ref, hw_ref, b2_ref, o_ref, acc_ref):
        k = pl.program_id(1)

        @pl.when(k == 0)
        def _():
            acc_ref[...] = jnp.zeros_like(acc_ref)

        if hw_resident:
            hw = hw_ref[pl.ds(pl.multiple_of(k * tk, tk), tk), :]
        else:
            hw = hw_ref[...]
        acc_ref[...] += jnp.dot(a_ref[...], hw, preferred_element_type=jnp.float32)

        @pl.when(k == pl.num_programs(1) - 1)
        def _():
            z = acc_ref[...] + b2_ref[...]
            o_ref[...] = _masked_log_softmax(z, num_classes)

    return kernel


def _layer2_aggregate(a_bf, hw_bf, b2p, num_classes, tm, tk, hw_resident, vmem):
    n = a_bf.shape[0]
    o_pad = hw_bf.shape[1]
    if hw_resident:
        hw_spec = pl.BlockSpec((n, o_pad), lambda i, k: (0, 0))
    else:
        hw_spec = pl.BlockSpec((tk, o_pad), lambda i, k: (k, 0))
    return pl.pallas_call(
        _make_layer2_agg_kernel(tk, hw_resident, num_classes),
        out_shape=jax.ShapeDtypeStruct((n, o_pad), jnp.float32),
        grid=(n // tm, n // tk),
        in_specs=[
            pl.BlockSpec((tm, tk), lambda i, k: (i, k)),
            hw_spec,
            pl.BlockSpec((1, o_pad), lambda i, k: (0, 0)),
        ],
        out_specs=pl.BlockSpec((tm, o_pad), lambda i, k: (i, 0)),
        scratch_shapes=[pltpu.VMEM((tm, o_pad), jnp.float32)],
        compiler_params=pltpu.CompilerParams(
            dimension_semantics=("parallel", "arbitrary"), vmem_limit_bytes=vmem
        ),
    )(a_bf, hw_bf, b2p)


# ----------------------------- forward wrappers --------------------------------


def gcn_forward_tiled(a_hat, x, w1, b1, w2, b2, *, tm=None, tk=None, xw_resident=None):
    """Tiled 3-kernel path: X@W1  ->  [A@XW + b1, ReLU, @W2 fused]  ->  A@HW2 + softmax."""
    n = a_hat.shape[0]
    o = w2.shape[1]
    w1p, b1p, w2p, b2p, h_pad, _ = _pad_params(w1, b1, w2, b2)
    vmem = _vmem_budget_bytes()

    if tm is None:
        tm = _row_tile(n)
    if tk is None:
        tk = _k_tile(n)
    if xw_resident is None:
        xw_resident = (n * h_pad * 2) <= vmem // 4  # keep XW/HW2 resident if cheap

    a_bf = a_hat.astype(jnp.bfloat16)
    x_bf = x.astype(jnp.bfloat16)

    xw1 = _linear(x_bf, w1p, tm, vmem)                                   # [N,128] bf16
    hw2 = _layer1_aggregate(a_bf, xw1, b1p, w2p, tm, tk, xw_resident, vmem)  # [N,128] bf16
    z = _layer2_aggregate(a_bf, hw2, b2p, o, tm, tk, xw_resident, vmem)      # [N,128] f32
    return z[:, :o]


def gcn_forward(a_hat, x, w1, b1, w2, b2):
    """Eval-mode forward: log_softmax(A(ReLU(A X W1 + b1)) W2 + b2)."""
    n = a_hat.shape[0]
    din = x.shape[1]
    o = w2.shape[1]
    w1p, b1p, w2p, b2p, h_pad, o_pad = _pad_params(w1, b1, w2, b2)
    vmem = _vmem_budget_bytes()

    # Rough resident footprint of the fully fused kernel (operands + temporaries).
    fused_bytes = (
        n * n * 2 + n * din * 2 + din * h_pad * 2 + h_pad * o_pad * 2
        + 6 * n * max(h_pad, o_pad) * 4
    )
    if fused_bytes <= vmem // 2:
        a_bf = a_hat.astype(jnp.bfloat16)
        x_bf = x.astype(jnp.bfloat16)
        z = _forward_fused(a_bf, x_bf, w1p, b1p, w2p, b2p, o, vmem)
        return z[:, :o]
    return gcn_forward_tiled(a_hat, x, w1, b1, w2, b2)


# ----------------------------- plain-JAX glue ----------------------------------


def build_normalized_adjacency(edge_index, num_nodes):
    """Dense D^-1/2 (A + I) D^-1/2, matching PyG GCNConv default normalization."""
    src, dst = edge_index[0], edge_index[1]
    adj = jnp.zeros((num_nodes, num_nodes), jnp.float32)
    adj = adj.at[dst, src].add(1.0)                    # message flow: src -> dst
    adj = adj + jnp.eye(num_nodes, dtype=jnp.float32)  # add self loops
    deg = jnp.sum(adj, axis=1)
    dinv = jnp.where(deg > 0, 1.0 / jnp.sqrt(deg), 0.0)
    return dinv[:, None] * adj * dinv[None, :]


def gcn_reference(a_hat, x, w1, b1, w2, b2):
    """Pure-JAX reference with the same bf16 operand / f32 accumulate scheme."""
    bf, f32 = jnp.bfloat16, jnp.float32
    a = a_hat.astype(bf)
    xw1 = jnp.dot(x.astype(bf), w1.astype(bf), preferred_element_type=f32)
    h = jnp.maximum(
        jnp.dot(a, xw1.astype(bf), preferred_element_type=f32) + b1.astype(f32), 0.0
    )
    hw2 = jnp.dot(h.astype(bf), w2.astype(bf), preferred_element_type=f32)
    z = jnp.dot(a, hw2.astype(bf), preferred_element_type=f32) + b2.astype(f32)
    return jax.nn.log_softmax(z, axis=1)


if __name__ == "__main__":
    hidden_dim = 64
    output_dim = 5
    input_dim = 768  # BERT-base mean-pooled embedding width

    _vmem_budget_bytes()  # prime the hardware query outside of jit tracing

    def make_problem(key, n, num_edges):
        kx, ke1, ke2, kw1, kw2 = jax.random.split(key, 5)
        x = jax.random.normal(kx, (n, input_dim), dtype=jnp.float32)
        src = jax.random.randint(ke1, (num_edges,), 0, n)
        off = jax.random.randint(ke2, (num_edges,), 1, n)
        dst = (src + off) % n
        edge_index = jnp.stack([src, dst], axis=0)
        a_hat = build_normalized_adjacency(edge_index, n)
        s1 = (6.0 / (input_dim + hidden_dim)) ** 0.5
        s2 = (6.0 / (hidden_dim + output_dim)) ** 0.5
        w1 = jax.random.uniform(kw1, (input_dim, hidden_dim), jnp.float32, -s1, s1)
        w2 = jax.random.uniform(kw2, (hidden_dim, output_dim), jnp.float32, -s2, s2)
        b1 = jnp.zeros((1, hidden_dim), jnp.float32)
        b2 = jnp.zeros((1, output_dim), jnp.float32)
        return a_hat, x, w1, b1, w2, b2

    key = jax.random.PRNGKey(0)
    k_small, k_big = jax.random.split(key)
    prob_small = make_problem(k_small, n=64, num_edges=256)
    prob_big = make_problem(k_big, n=256, num_edges=1024)

    # 1) Small graph -> single fully-fused resident kernel.
    out_small = jax.block_until_ready(jax.jit(gcn_forward)(*prob_small))
    ref_small = gcn_reference(*prob_small)
    assert out_small.shape == (64, output_dim)
    assert bool(jnp.allclose(jnp.sum(jnp.exp(out_small), axis=1), 1.0, atol=1e-3))
    assert bool(jnp.allclose(out_small, ref_small, atol=2e-2, rtol=1e-2))

    # 2) Tiled path: resident XW/HW2, 2 row tiles (megacore), 2-step k reduction.
    f_res = jax.jit(functools.partial(gcn_forward_tiled, tm=128, tk=128, xw_resident=True))
    out_res = jax.block_until_ready(f_res(*prob_big))
    ref_big = gcn_reference(*prob_big)
    assert out_res.shape == (256, output_dim)
    assert bool(jnp.allclose(jnp.sum(jnp.exp(out_res), axis=1), 1.0, atol=1e-3))
    assert bool(jnp.allclose(out_res, ref_big, atol=2e-2, rtol=1e-2))

    # 3) Tiled path with streamed XW/HW2 (the very-large-N fallback).
    f_str = jax.jit(functools.partial(gcn_forward_tiled, tm=128, tk=128, xw_resident=False))
    out_str = jax.block_until_ready(f_str(*prob_big))
    assert bool(jnp.allclose(out_str, ref_big, atol=2e-2, rtol=1e-2))

    print("KERNEL_OK")
</pallas_src>

<mosaic_0001>
module attributes {stable_mosaic.version = 11 : i64} {
  func.func @kernel(%arg0: memref<64x64xbf16, #tpu.memory_space<vmem>>, %arg1: memref<64x768xbf16, #tpu.memory_space<vmem>>, %arg2: memref<768x128xbf16, #tpu.memory_space<vmem>>, %arg3: memref<1x128xf32, #tpu.memory_space<vmem>>, %arg4: memref<128x128xbf16, #tpu.memory_space<vmem>>, %arg5: memref<1x128xf32, #tpu.memory_space<vmem>>, %arg6: memref<64x128xf32, #tpu.memory_space<vmem>>) attributes {dimension_semantics = [], scalar_prefetch = 0 : i64, scratch_operands = 0 : i64, tpu.core_type = #tpu.core_type<tc>} {
    %c0 = arith.constant 0 : index
    %c0_0 = arith.constant 0 : index
    %0 = vector.load %arg1[%c0, %c0_0] : memref<64x768xbf16, #tpu.memory_space<vmem>>, vector<64x768xbf16>
    %c0_1 = arith.constant 0 : index
    %c0_2 = arith.constant 0 : index
    %1 = vector.load %arg2[%c0_1, %c0_2] : memref<768x128xbf16, #tpu.memory_space<vmem>>, vector<768x128xbf16>
    %cst = arith.constant dense<0.000000e+00> : vector<64x128xf32>
    %2 = tpu.matmul %0, %1, %cst {dimension_numbers = #tpu.dot_dimension_numbers<[1], [0], [0], [1], [0, 0, 1, 1], [], []>} : vector<64x768xbf16>, vector<768x128xbf16>, vector<64x128xf32> -> vector<64x128xf32>
    %c0_3 = arith.constant 0 : index
    %c0_4 = arith.constant 0 : index
    %3 = vector.load %arg0[%c0_3, %c0_4] : memref<64x64xbf16, #tpu.memory_space<vmem>>, vector<64x64xbf16>
    %4 = arith.truncf %2 : vector<64x128xf32> to vector<64x128xbf16>
    %cst_5 = arith.constant dense<0.000000e+00> : vector<64x128xf32>
    %5 = tpu.matmul %3, %4, %cst_5 {dimension_numbers = #tpu.dot_dimension_numbers<[1], [0], [0], [1], [0, 0, 1, 1], [], []>} : vector<64x64xbf16>, vector<64x128xbf16>, vector<64x128xf32> -> vector<64x128xf32>
    %c0_6 = arith.constant 0 : index
    %c0_7 = arith.constant 0 : index
    %6 = vector.load %arg3[%c0_6, %c0_7] : memref<1x128xf32, #tpu.memory_space<vmem>>, vector<1x128xf32>
    %7 = vector.broadcast %6 : vector<1x128xf32> to vector<64x128xf32>
    %8 = arith.addf %5, %7 : vector<64x128xf32>
    %cst_8 = arith.constant 0.000000e+00 : f32
    %9 = vector.broadcast %cst_8 : f32 to vector<64x128xf32>
    %10 = arith.maximumf %8, %9 : vector<64x128xf32>
    %11 = arith.truncf %10 : vector<64x128xf32> to vector<64x128xbf16>
    %c0_9 = arith.constant 0 : index
    %c0_10 = arith.constant 0 : index
    %12 = vector.load %arg4[%c0_9, %c0_10] : memref<128x128xbf16, #tpu.memory_space<vmem>>, vector<128x128xbf16>
    %cst_11 = arith.constant dense<0.000000e+00> : vector<64x128xf32>
    %13 = tpu.matmul %11, %12, %cst_11 {dimension_numbers = #tpu.dot_dimension_numbers<[1], [0], [0], [1], [0, 0, 1, 1], [], []>} : vector<64x128xbf16>, vector<128x128xbf16>, vector<64x128xf32> -> vector<64x128xf32>
    %c0_12 = arith.constant 0 : index
    %c0_13 = arith.constant 0 : index
    %14 = vector.load %arg0[%c0_12, %c0_13] : memref<64x64xbf16, #tpu.memory_space<vmem>>, vector<64x64xbf16>
    %15 = arith.truncf %13 : vector<64x128xf32> to vector<64x128xbf16>
    %cst_14 = arith.constant dense<0.000000e+00> : vector<64x128xf32>
    %16 = tpu.matmul %14, %15, %cst_14 {dimension_numbers = #tpu.dot_dimension_numbers<[1], [0], [0], [1], [0, 0, 1, 1], [], []>} : vector<64x64xbf16>, vector<64x128xbf16>, vector<64x128xf32> -> vector<64x128xf32>
    %c0_15 = arith.constant 0 : index
    %c0_16 = arith.constant 0 : index
    %17 = vector.load %arg5[%c0_15, %c0_16] : memref<1x128xf32, #tpu.memory_space<vmem>>, vector<1x128xf32>
    %18 = vector.broadcast %17 : vector<1x128xf32> to vector<64x128xf32>
    %19 = arith.addf %16, %18 : vector<64x128xf32>
    %20 = tpu.iota {dimensions = array<i32: 1>} : vector<64x128xi32>
    %c5_i32 = arith.constant 5 : i32
    %21 = vector.broadcast %c5_i32 : i32 to vector<64x128xi32>
    %22 = arith.cmpi slt, %20, %21 : vector<64x128xi32>
    %cst_17 = arith.constant 0xFF800000 : f32
    %23 = vector.broadcast %cst_17 : f32 to vector<64x128xf32>
    %24 = arith.select %22, %19, %23 : vector<64x128xi1>, vector<64x128xf32>
    %cst_18 = arith.constant dense<0xFF800000> : vector<64xf32>
    %25 = vector.multi_reduction <maximumf>, %24, %cst_18 [1] : vector<64x128xf32> to vector<64xf32>
    %26 = vector.shape_cast %25 : vector<64xf32> to vector<64x1xf32>
    %27 = vector.broadcast %26 : vector<64x1xf32> to vector<64x128xf32>
    %28 = arith.subf %24, %27 : vector<64x128xf32>
    %29 = math.exp %28 : vector<64x128xf32>
    %cst_19 = arith.constant dense<0.000000e+00> : vector<64xf32>
    %30 = vector.multi_reduction <add>, %29, %cst_19 [1] : vector<64x128xf32> to vector<64xf32>
    %31 = vector.shape_cast %30 : vector<64xf32> to vector<64x1xf32>
    %32 = math.log %31 : vector<64x1xf32>
    %33 = arith.addf %32, %26 : vector<64x1xf32>
    %34 = vector.broadcast %33 : vector<64x1xf32> to vector<64x128xf32>
    %35 = arith.subf %24, %34 : vector<64x128xf32>
    %c0_20 = arith.constant 0 : index
    %c0_21 = arith.constant 0 : index
    %36 = vector.load %arg6[%c0_20, %c0_21] : memref<64x128xf32, #tpu.memory_space<vmem>>, vector<64x128xf32>
    tpu.vector_store %arg6[%c0_20, %c0_21], %35 {strides = array<i32>} : memref<64x128xf32, #tpu.memory_space<vmem>>, vector<64x128xf32>,
    return
  }
}

</mosaic_0001>

<llo_original>
// kernel: gcn_forward.1
$region0: #{gcn_forward.1}
  #allocation0 [shape = 'u32[]', space=smem, size = 0x4, offset = 0x4, fixed_abs, tag = 'smem constant byte address 0x4 - core index']
  #allocation1 [shape = 'u32[144,128]{1,0:T(1,128)}', space=vmem, size = 0x12000, scoped, tag = 'internal scratch']
  %s0 = inlined_call_operand.vmem [shape: bf16[64,64], index: 0, kind: input, shape index: {}]
  %s1 = inlined_call_operand.vmem [shape: bf16[64,768], index: 1, kind: input, shape index: {}]
  %s2 = inlined_call_operand.vmem [shape: bf16[768,128], index: 2, kind: input, shape index: {}]
  %s3 = inlined_call_operand.vmem [shape: f32[1,128], index: 3, kind: input, shape index: {}]
  %s4 = inlined_call_operand.vmem [shape: bf16[128,128], index: 4, kind: input, shape index: {}]
  %s5 = inlined_call_operand.vmem [shape: f32[1,128], index: 5, kind: input, shape index: {}]
  %s6 = inlined_call_operand.vmem [shape: f32[64,128], index: 6, kind: output, shape index: {}]
  %s7 = sld [smem:[#allocation0]]
  $region34: #{gcn_forward.1} parent=0
    _
  %s9 = ssub.s32 1, %s7
  %s10 = scalar_select 0, %s9, %s7
  // Predicated region
  $region2: #{gcn_forward.1} parent=0 // pred_check
    _
  $region3: #{gcn_forward.1} parent=0 // pred_check_branch
    %12 = sbr.rel (0) target = $region5
  $region4: #{gcn_forward.1} parent=0 // pred_region
    _
  $region5: #{gcn_forward.1} parent=0 // pred_fallthru
    _
  // Predicated region
  $region6: #{gcn_forward.1} parent=0 // pred_check
    _
  $region7: #{gcn_forward.1} parent=0 // pred_check_branch
    %14 = sbr.rel (0) target = $region9
  $region8: #{gcn_forward.1} parent=0 // pred_region
    _
  $region9: #{gcn_forward.1} parent=0 // pred_fallthru
    _
  // Predicated region
  $region10: #{gcn_forward.1} parent=0 // pred_check
    _
  $region11: #{gcn_forward.1} parent=0 // pred_check_branch
    %16 = sbr.rel (0) target = $region13
  $region12: #{gcn_forward.1} parent=0 // pred_region
    _
  $region13: #{gcn_forward.1} parent=0 // pred_fallthru
    _
  // Predicated region
  $region14: #{gcn_forward.1} parent=0 // pred_check
    _
  $region15: #{gcn_forward.1} parent=0 // pred_check_branch
    %18 = sbr.rel (0) target = $region17
  $region16: #{gcn_forward.1} parent=0 // pred_region
    _
  $region17: #{gcn_forward.1} parent=0 // pred_fallthru
    _
  // Predicated region
  $region18: #{gcn_forward.1} parent=0 // pred_check
    _
  $region19: #{gcn_forward.1} parent=0 // pred_check_branch
    %20 = sbr.rel (0) target = $region21
  $region20: #{gcn_forward.1} parent=0 // pred_region
    _
  $region21: #{gcn_forward.1} parent=0 // pred_fallthru
    _
  // Predicated region
  $region22: #{gcn_forward.1} parent=0 // pred_check
    _
  $region23: #{gcn_forward.1} parent=0 // pred_check_branch
    %22 = sbr.rel (0) target = $region25
  $region24: #{gcn_forward.1} parent=0 // pred_region
    _
  $region25: #{gcn_forward.1} parent=0 // pred_fallthru
    _
  %v24 = vld [vmem:[%s1] sm:$0xff]
  %v25 = vld [vmem:[%s1 + $0x8] sm:$0xff]
  %v26 = vld [vmem:[%s1 + $0x10] sm:$0xff]
  %v27 = vld [vmem:[%s1 + $0x18] sm:$0xff]
  %v28 = vld [vmem:[%s1 + $0x20] sm:$0xff]
  %v29 = vld [vmem:[%s1 + $0x28] sm:$0xff]
  %v30 = vld [vmem:[%s1 + $0x30] sm:$0xff]
  %v31 = vld [vmem:[%s1 + $0x38] sm:$0xff]
  %v32 = vld [vmem:[%s1 + $0x40] sm:$0xff]
  %v33 = vld [vmem:[%s1 + $0x48] sm:$0xff]
  %v34 = vld [vmem:[%s1 + $0x50] sm:$0xff]
  %v35 = vld [vmem:[%s1 + $0x58] sm:$0xff]
  %v36 = vld [vmem:[%s1 + $0x60] sm:$0xff]
  %v37 = vld [vmem:[%s1 + $0x68] sm:$0xff]
  %v38 = vld [vmem:[%s1 + $0x70] sm:$0xff]
  %v39 = vld [vmem:[%s1 + $0x78] sm:$0xff]
  %v40 = vld [vmem:[%s1 + $0x80] sm:$0xff]
  %v41 = vld [vmem:[%s1 + $0x88] sm:$0xff]
  %v42 = vld [vmem:[%s1 + $0x90] sm:$0xff]
  %v43 = vld [vmem:[%s1 + $0x98] sm:$0xff]
  %v44 = vld [vmem:[%s1 + $0xa0] sm:$0xff]
  %v45 = vld [vmem:[%s1 + $0xa8] sm:$0xff]
  %v46 = vld [vmem:[%s1 + $0xb0] sm:$0xff]
  %v47 = vld [vmem:[%s1 + $0xb8] sm:$0xff]
  %v48 = vld [vmem:[%s2] sm:$0xf]
  %v49 = vld [vmem:[%s2 + $0x4] sm:$0xf]
  %v50 = vld [vmem:[%s2 + $0x8] sm:$0xf]
  %v51 = vld [vmem:[%s2 + $0xc] sm:$0xf]
  %v52 = vld [vmem:[%s2 + $0x10] sm:$0xf]
  %v53 = vld [vmem:[%s2 + $0x14] sm:$0xf]
  %v54 = vld [vmem:[%s2 + $0x18] sm:$0xf]
  %v55 = vld [vmem:[%s2 + $0x1c] sm:$0xf]
  %v56 = vld [vmem:[%s2 + $0x20] sm:$0xf]
  %v57 = vld [vmem:[%s2 + $0x24] sm:$0xf]
  %v58 = vld [vmem:[%s2 + $0x28] sm:$0xf]
  %v59 = vld [vmem:[%s2 + $0x2c] sm:$0xf]
  %v60 = vld [vmem:[%s2 + $0x30] sm:$0xf]
  %v61 = vld [vmem:[%s2 + $0x34] sm:$0xf]
  %v62 = vld [vmem:[%s2 + $0x38] sm:$0xf]
  %v63 = vld [vmem:[%s2 + $0x3c] sm:$0xf]
  %v64 = vld [vmem:[%s2 + $0x40] sm:$0xf]
  %v65 = vld [vmem:[%s2 + $0x44] sm:$0xf]
  %v66 = vld [vmem:[%s2 + $0x48] sm:$0xf]
  %v67 = vld [vmem:[%s2 + $0x4c] sm:$0xf]
  %v68 = vld [vmem:[%s2 + $0x50] sm:$0xf]
  %v69 = vld [vmem:[%s2 + $0x54] sm:$0xf]
  %v70 = vld [vmem:[%s2 + $0x58] sm:$0xf]
  %v71 = vld [vmem:[%s2 + $0x5c] sm:$0xf]
  %v72 = vld [vmem:[%s2 + $0x60] sm:$0xf]
  %v73 = vld [vmem:[%s2 + $0x64] sm:$0xf]
  %v74 = vld [vmem:[%s2 + $0x68] sm:$0xf]
  %v75 = vld [vmem:[%s2 + $0x6c] sm:$0xf]
  %v76 = vld [vmem:[%s2 + $0x70] sm:$0xf]
  %v77 = vld [vmem:[%s2 + $0x74] sm:$0xf]
  %v78 = vld [vmem:[%s2 + $0x78] sm:$0xf]
  %v79 = vld [vmem:[%s2 + $0x7c] sm:$0xf]
  %v80 = vld [vmem:[%s2 + $0x80] sm:$0xf]
  %v81 = vld [vmem:[%s2 + $0x84] sm:$0xf]
  %v82 = vld [vmem:[%s2 + $0x88] sm:$0xf]
  %v83 = vld [vmem:[%s2 + $0x8c] sm:$0xf]
  %v84 = vld [vmem:[%s2 + $0x90] sm:$0xf]
  %v85 = vld [vmem:[%s2 + $0x94] sm:$0xf]
  %v86 = vld [vmem:[%s2 + $0x98] sm:$0xf]
  %v87 = vld [vmem:[%s2 + $0x9c] sm:$0xf]
  %v88 = vld [vmem:[%s2 + $0xa0] sm:$0xf]
  %v89 = vld [vmem:[%s2 + $0xa4] sm:$0xf]
  %v90 = vld [vmem:[%s2 + $0xa8] sm:$0xf]
  %v91 = vld [vmem:[%s2 + $0xac] sm:$0xf]
  %v92 = vld [vmem:[%s2 + $0xb0] sm:$0xf]
  %v93 = vld [vmem:[%s2 + $0xb4] sm:$0xf]
  %v94 = vld [vmem:[%s2 + $0xb8] sm:$0xf]
  %v95 = vld [vmem:[%s2 + $0xbc] sm:$0xf]
  %v96 = vld [vmem:[%s2 + $0xc0] sm:$0xf]
  %v97 = vld [vmem:[%s2 + $0xc4] sm:$0xf]
  %v98 = vld [vmem:[%s2 + $0xc8] sm:$0xf]
  %v99 = vld [vmem:[%s2 + $0xcc] sm:$0xf]
  %v100 = vld [vmem:[%s2 + $0xd0] sm:$0xf]
  %v101 = vld [vmem:[%s2 + $0xd4] sm:$0xf]
  %v102 = vld [vmem:[%s2 + $0xd8] sm:$0xf]
  %v103 = vld [vmem:[%s2 + $0xdc] sm:$0xf]
  %v104 = vld [vmem:[%s2 + $0xe0] sm:$0xf]
  %v105 = vld [vmem:[%s2 + $0xe4] sm:$0xf]
  %v106 = vld [vmem:[%s2 + $0xe8] sm:$0xf]
  %v107 = vld [vmem:[%s2 + $0xec] sm:$0xf]
  %v108 = vld [vmem:[%s2 + $0xf0] sm:$0xf]
  %v109 = vld [vmem:[%s2 + $0xf4] sm:$0xf]
  %v110 = vld [vmem:[%s2 + $0xf8] sm:$0xf]
  %v111 = vld [vmem:[%s2 + $0xfc] sm:$0xf]
  %v112 = vld [vmem:[%s2 + $0x100] sm:$0xf]
  %v113 = vld [vmem:[%s2 + $0x104] sm:$0xf]
  %v114 = vld [vmem:[%s2 + $0x108] sm:$0xf]
  %v115 = vld [vmem:[%s2 + $0x10c] sm:$0xf]
  %v116 = vld [vmem:[%s2 + $0x110] sm:$0xf]
  %v117 = vld [vmem:[%s2 + $0x114] sm:$0xf]
  %v118 = vld [vmem:[%s2 + $0x118] sm:$0xf]
  %v119 = vld [vmem:[%s2 + $0x11c] sm:$0xf]
  %v120 = vld [vmem:[%s2 + $0x120] sm:$0xf]
  %v121 = vld [vmem:[%s2 + $0x124] sm:$0xf]
  %v122 = vld [vmem:[%s2 + $0x128] sm:$0xf]
  %v123 = vld [vmem:[%s2 + $0x12c] sm:$0xf]
  %v124 = vld [vmem:[%s2 + $0x130] sm:$0xf]
  %v125 = vld [vmem:[%s2 + $0x134] sm:$0xf]
  %v126 = vld [vmem:[%s2 + $0x138] sm:$0xf]
  %v127 = vld [vmem:[%s2 + $0x13c] sm:$0xf]
  %v128 = vld [vmem:[%s2 + $0x140] sm:$0xf]
  %v129 = vld [vmem:[%s2 + $0x144] sm:$0xf]
  %v130 = vld [vmem:[%s2 + $0x148] sm:$0xf]
  %v131 = vld [vmem:[%s2 + $0x14c] sm:$0xf]
  %v132 = vld [vmem:[%s2 + $0x150] sm:$0xf]
  %v133 = vld [vmem:[%s2 + $0x154] sm:$0xf]
  %v134 = vld [vmem:[%s2 + $0x158] sm:$0xf]
  %v135 = vld [vmem:[%s2 + $0x15c] sm:$0xf]
  %v136 = vld [vmem:[%s2 + $0x160] sm:$0xf]
  %v137 = vld [vmem:[%s2 + $0x164] sm:$0xf]
  %v138 = vld [vmem:[%s2 + $0x168] sm:$0xf]
  %v139 = vld [vmem:[%s2 + $0x16c] sm:$0xf]
  %v140 = vld [vmem:[%s2 + $0x170] sm:$0xf]
  %v141 = vld [vmem:[%s2 + $0x174] sm:$0xf]
  %v142 = vld [vmem:[%s2 + $0x178] sm:$0xf]
  %v143 = vld [vmem:[%s2 + $0x17c] sm:$0xf]
  %v168 = vunpack.c.l.b16 %v24
  %v169 = vunpack.c.h.b16 %v24
  %v170 = vunpack.c.l.b16 %v25
  %v171 = vunpack.c.h.b16 %v25
  %v172 = vunpack.c.l.b16 %v26
  %v173 = vunpack.c.h.b16 %v26
  %v174 = vunpack.c.l.b16 %v27
  %v175 = vunpack.c.h.b16 %v27
  %v176 = vunpack.c.l.b16 %v28
  %v177 = vunpack.c.h.b16 %v28
  %v178 = vunpack.c.l.b16 %v29
  %v179 = vunpack.c.h.b16 %v29
  %v180 = vunpack.c.l.b16 %v30
  %v181 = vunpack.c.h.b16 %v30
  %v182 = vunpack.c.l.b16 %v31
  %v183 = vunpack.c.h.b16 %v31
  %v184 = vunpack.c.l.b16 %v32
  %v185 = vunpack.c.h.b16 %v32
  %v186 = vunpack.c.l.b16 %v33
  %v187 = vunpack.c.h.b16 %v33
  %v188 = vunpack.c.l.b16 %v34
  %v189 = vunpack.c.h.b16 %v34
  %v190 = vunpack.c.l.b16 %v35
  %v191 = vunpack.c.h.b16 %v35
  %v192 = vunpack.c.l.b16 %v36
  %v193 = vunpack.c.h.b16 %v36
  %v194 = vunpack.c.l.b16 %v37
  %v195 = vunpack.c.h.b16 %v37
  %v196 = vunpack.c.l.b16 %v38
  %v197 = vunpack.c.h.b16 %v38
  %v198 = vunpack.c.l.b16 %v39
  %v199 = vunpack.c.h.b16 %v39
  %v200 = vunpack.c.l.b16 %v40
  %v201 = vunpack.c.h.b16 %v40
  %v202 = vunpack.c.l.b16 %v41
  %v203 = vunpack.c.h.b16 %v41
  %v204 = vunpack.c.l.b16 %v42
  %v205 = vunpack.c.h.b16 %v42
  %v206 = vunpack.c.l.b16 %v43
  %v207 = vunpack.c.h.b16 %v43
  %v208 = vunpack.c.l.b16 %v44
  %v209 = vunpack.c.h.b16 %v44
  %v210 = vunpack.c.l.b16 %v45
  %v211 = vunpack.c.h.b16 %v45
  %v212 = vunpack.c.l.b16 %v46
  %v213 = vunpack.c.h.b16 %v46
  %v214 = vunpack.c.l.b16 %v47
  %v215 = vunpack.c.h.b16 %v47
  %v216 = vpack.c.b16 %v174, %v168
  %v217 = vpack.c.b16 %v175, %v169
  %v218 = vpack.c.b16 %v176, %v170
  %v219 = vpack.c.b16 %v177, %v171
  %v220 = vpack.c.b16 %v178, %v172
  %v221 = vpack.c.b16 %v179, %v173
  %v222 = vpack.c.b16 %v186, %v180
  %v223 = vpack.c.b16 %v187, %v181
  %v224 = vpack.c.b16 %v188, %v182
  %v225 = vpack.c.b16 %v189, %v183
  %v226 = vpack.c.b16 %v190, %v184
  %v227 = vpack.c.b16 %v191, %v185
  %v228 = vpack.c.b16 %v198, %v192
  %v229 = vpack.c.b16 %v199, %v193
  %v230 = vpack.c.b16 %v200, %v194
  %v231 = vpack.c.b16 %v201, %v195
  %v232 = vpack.c.b16 %v202, %v196
  %v233 = vpack.c.b16 %v203, %v197
  %v234 = vpack.c.b16 %v210, %v204
  %v235 = vpack.c.b16 %v211, %v205
  %v236 = vpack.c.b16 %v212, %v206
  %v237 = vpack.c.b16 %v213, %v207
  %v238 = vpack.c.b16 %v214, %v208
  %v239 = vpack.c.b16 %v215, %v209
  %v360 = vunpack.c.l.b16 %v48
  %v361 = vunpack.c.l.b16 %v49
  %v362 = vunpack.c.l.b16 %v50
  %v363 = vunpack.c.l.b16 %v51
  %v364 = vunpack.c.l.b16 %v52
  %v365 = vunpack.c.l.b16 %v53
  %v366 = vunpack.c.l.b16 %v54
  %v367 = vunpack.c.l.b16 %v55
  %v368 = vunpack.c.l.b16 %v56
  %v369 = vunpack.c.l.b16 %v57
  %v370 = vunpack.c.l.b16 %v58
  %v371 = vunpack.c.l.b16 %v59
  %v372 = vunpack.c.l.b16 %v60
  %v373 = vunpack.c.l.b16 %v61
  %v374 = vunpack.c.l.b16 %v62
  %v375 = vunpack.c.l.b16 %v63
  %v376 = vunpack.c.l.b16 %v64
  %v377 = vunpack.c.l.b16 %v65
  %v378 = vunpack.c.l.b16 %v66
  %v379 = vunpack.c.l.b16 %v67
  %v380 = vunpack.c.l.b16 %v68
  %v381 = vunpack.c.l.b16 %v69
  %v382 = vunpack.c.l.b16 %v70
  %v383 = vunpack.c.l.b16 %v71
  %v384 = vunpack.c.l.b16 %v72
  %v385 = vunpack.c.l.b16 %v73
  %v386 = vunpack.c.l.b16 %v74
  %v387 = vunpack.c.l.b16 %v75
  %v388 = vunpack.c.l.b16 %v76
  %v389 = vunpack.c.l.b16 %v77
  %v390 = vunpack.c.l.b16 %v78
  %v391 = vunpack.c.l.b16 %v79
  %v392 = vunpack.c.l.b16 %v80
  %v393 = vunpack.c.l.b16 %v81
  %v394 = vunpack.c.l.b16 %v82
  %v395 = vunpack.c.l.b16 %v83
  %v396 = vunpack.c.l.b16 %v84
  %v397 = vunpack.c.l.b16 %v85
  %v398 = vunpack.c.l.b16 %v86
  %v399 = vunpack.c.l.b16 %v87
  %v400 = vunpack.c.l.b16 %v88
  %v401 = vunpack.c.l.b16 %v89
  %v402 = vunpack.c.l.b16 %v90
  %v403 = vunpack.c.l.b16 %v91
  %v404 = vunpack.c.l.b16 %v92
  %v405 = vunpack.c.l.b16 %v93
  %v406 = vunpack.c.l.b16 %v94
  %v407 = vunpack.c.l.b16 %v95
  %v408 = vunpack.c.l.b16 %v96
  %v409 = vunpack.c.l.b16 %v97
  %v410 = vunpack.c.l.b16 %v98
  %v411 = vunpack.c.l.b16 %v99
  %v412 = vunpack.c.l.b16 %v100
  %v413 = vunpack.c.l.b16 %v101
  %v414 = vunpack.c.l.b16 %v102
  %v415 = vunpack.c.l.b16 %v103
  %v416 = vunpack.c.l.b16 %v104
  %v417 = vunpack.c.l.b16 %v105
  %v418 = vunpack.c.l.b16 %v106
  %v419 = vunpack.c.l.b16 %v107
  %v420 = vunpack.c.l.b16 %v108
  %v421 = vunpack.c.l.b16 %v109
  %v422 = vunpack.c.l.b16 %v110
  %v423 = vunpack.c.l.b16 %v111
  %v424 = vunpack.c.l.b16 %v112
  %v425 = vunpack.c.l.b16 %v113
  %v426 = vunpack.c.l.b16 %v114
  %v427 = vunpack.c.l.b16 %v115
  %v428 = vunpack.c.l.b16 %v116
  %v429 = vunpack.c.l.b16 %v117
  %v430 = vunpack.c.l.b16 %v118
  %v431 = vunpack.c.l.b16 %v119
  %v432 = vunpack.c.l.b16 %v120
  %v433 = vunpack.c.l.b16 %v121
  %v434 = vunpack.c.l.b16 %v122
  %v435 = vunpack.c.l.b16 %v123
  %v436 = vunpack.c.l.b16 %v124
  %v437 = vunpack.c.l.b16 %v125
  %v438 = vunpack.c.l.b16 %v126
  %v439 = vunpack.c.l.b16 %v127
  %v440 = vunpack.c.l.b16 %v128
  %v441 = vunpack.c.l.b16 %v129
  %v442 = vunpack.c.l.b16 %v130
  %v443 = vunpack.c.l.b16 %v131
  %v444 = vunpack.c.l.b16 %v132
  %v445 = vunpack.c.l.b16 %v133
  %v446 = vunpack.c.l.b16 %v134
  %v447 = vunpack.c.l.b16 %v135
  %v448 = vunpack.c.l.b16 %v136
  %v449 = vunpack.c.l.b16 %v137
  %v450 = vunpack.c.l.b16 %v138
  %v451 = vunpack.c.l.b16 %v139
  %v452 = vunpack.c.l.b16 %v140
  %v453 = vunpack.c.l.b16 %v141
  %v454 = vunpack.c.l.b16 %v142
  %v455 = vunpack.c.l.b16 %v143
  %v456 = vpack.c.b16 %v361, %v360
  %v457 = vpack.c.b16 %v363, %v362
  %v458 = vpack.c.b16 %v365, %v364
  %v459 = vpack.c.b16 %v367, %v366
  %v460 = vpack.c.b16 %v369, %v368
  %v461 = vpack.c.b16 %v371, %v370
  %v462 = vpack.c.b16 %v373, %v372
  %v463 = vpack.c.b16 %v375, %v374
  %v464 = vpack.c.b16 %v377, %v376
  %v465 = vpack.c.b16 %v379, %v378
  %v466 = vpack.c.b16 %v381, %v380
  %v467 = vpack.c.b16 %v383, %v382
  %v468 = vpack.c.b16 %v385, %v384
  %v469 = vpack.c.b16 %v387, %v386
  %v470 = vpack.c.b16 %v389, %v388
  %v471 = vpack.c.b16 %v391, %v390
  %v472 = vpack.c.b16 %v393, %v392
  %v473 = vpack.c.b16 %v395, %v394
  %v474 = vpack.c.b16 %v397, %v396
  %v475 = vpack.c.b16 %v399, %v398
  %v476 = vpack.c.b16 %v401, %v400
  %v477 = vpack.c.b16 %v403, %v402
  %v478 = vpack.c.b16 %v405, %v404
  %v479 = vpack.c.b16 %v407, %v406
  %v480 = vpack.c.b16 %v409, %v408
  %v481 = vpack.c.b16 %v411, %v410
  %v482 = vpack.c.b16 %v413, %v412
  %v483 = vpack.c.b16 %v415, %v414
  %v484 = vpack.c.b16 %v417, %v416
  %v485 = vpack.c.b16 %v419, %v418
  %v486 = vpack.c.b16 %v421, %v420
  %v487 = vpack.c.b16 %v423, %v422
  %v488 = vpack.c.b16 %v425, %v424
  %v489 = vpack.c.b16 %v427, %v426
  %v490 = vpack.c.b16 %v429, %v428
  %v491 = vpack.c.b16 %v431, %v430
  %v492 = vpack.c.b16 %v433, %v432
  %v493 = vpack.c.b16 %v435, %v434
  %v494 = vpack.c.b16 %v437, %v436
  %v495 = vpack.c.b16 %v439, %v438
  %v496 = vpack.c.b16 %v441, %v440
  %v497 = vpack.c.b16 %v443, %v442
  %v498 = vpack.c.b16 %v445, %v444
  %v499 = vpack.c.b16 %v447, %v446
  %v500 = vpack.c.b16 %v449, %v448
  %v501 = vpack.c.b16 %v451, %v450
  %v502 = vpack.c.b16 %v453, %v452
  %v503 = vpack.c.b16 %v455, %v454
  %552 = vmatprep.subr.bf16.mxu0 0
  %553 = vmatpush1.bf16.msra.mxu0 %v463
  %554 = vmatprep.subr.bf16.mxu0 0
  %555 = vmatpush1.bf16.msra.mxu0 %v462
  %556 = vmatprep.subr.bf16.mxu0 0
  %557 = vmatpush1.bf16.msra.mxu0 %v461
  %558 = vmatprep.subr.bf16.mxu0 0
  %559 = vmatpush1.bf16.msra.mxu0 %v460
  %560 = vmatprep.subr.bf16.mxu0 0
  %561 = vmatpush1.bf16.msra.mxu0 %v459
  %562 = vmatprep.subr.bf16.mxu0 0
  %563 = vmatpush1.bf16.msra.mxu0 %v458
  %564 = vmatprep.subr.bf16.mxu0 0
  %565 = vmatpush1.bf16.msra.mxu0 %v457
  %566 = vmatprep.subr.bf16.mxu0 0
  %567 = vmatpush1.bf16.msra.mxu0 %v456
  %568 = vmatprep.subr.bf16.mxu0 0
  %569 = vmatpush2.bf16.msra.mxu0 %v471
  %570 = vmatprep.subr.bf16.mxu0 0
  %571 = vmatpush2.bf16.msra.mxu0 %v470
  %572 = vmatprep.subr.bf16.mxu0 0
  %573 = vmatpush2.bf16.msra.mxu0 %v469
  %574 = vmatprep.subr.bf16.mxu0 0
  %575 = vmatpush2.bf16.msra.mxu0 %v468
  %576 = vmatprep.subr.bf16.mxu0 0
  %577 = vmatpush2.bf16.msra.mxu0 %v467
  %578 = vmatprep.subr.bf16.mxu0 0
  %579 = vmatpush2.bf16.msra.mxu0 %v466
  %580 = vmatprep.subr.bf16.mxu0 0
  %581 = vmatpush2.bf16.msra.mxu0 %v465
  %582 = vmatprep.subr.bf16.mxu0 0
  %583 = vmatpush2.bf16.msra.mxu0 %v464
  %584 = vmatprep.mubr.bf16.mxu0 %v217
  %585 = vmatmul.mubr.bf16.gmra.mxu0 %v216
  %v586 = vpop.f32.mrf.mxu0
  %v587 = vadd.f32 0.0, %v586
  %v588 = vpop.f32.mrf.mxu0
  %v589 = vpop.f32.mrf.mxu0
  %v590 = vadd.f32 0.0, %v589
  %v591 = vpop.f32.mrf.mxu0
  %592 = vmatprep.mubr.bf16.mxu0 %v223
  %593 = vmatmul.mubr.bf16.gmra.mxu0 %v222
  %v594 = vpop.f32.mrf.mxu0
  %v595 = vadd.f32 0.0, %v594
  %v596 = vpop.f32.mrf.mxu0
  %v597 = vpop.f32.mrf.mxu0
  %v598 = vadd.f32 0.0, %v597
  %v599 = vpop.f32.mrf.mxu0
  %600 = vmatprep.mubr.bf16.mxu0 %v229
  %601 = vmatmul.mubr.bf16.gmra.mxu0 %v228
  %v602 = vpop.f32.mrf.mxu0
  %v603 = vadd.f32 0.0, %v602
  %v604 = vpop.f32.mrf.mxu0
  %v605 = vpop.f32.mrf.mxu0
  %v606 = vadd.f32 0.0, %v605
  %v607 = vpop.f32.mrf.mxu0
  %608 = vmatprep.mubr.bf16.mxu0 %v235
  %609 = vmatmul.mubr.bf16.gmra.mxu0 %v234
  %v610 = vpop.f32.mrf.mxu0
  %v611 = vadd.f32 0.0, %v610
  %v612 = vpop.f32.mrf.mxu0
  %v613 = vpop.f32.mrf.mxu0
  %v614 = vadd.f32 0.0, %v613
  %v615 = vpop.f32.mrf.mxu0
  %616 = vdwg.mxu0
  %617 = vmatprep.subr.bf16.mxu0 0
  %618 = vmatpush1.bf16.msra.mxu0 %v479
  %619 = vmatprep.subr.bf16.mxu0 0
  %620 = vmatpush1.bf16.msra.mxu0 %v478
  %621 = vmatprep.subr.bf16.mxu0 0
  %622 = vmatpush1.bf16.msra.mxu0 %v477
  %623 = vmatprep.subr.bf16.mxu0 0
  %624 = vmatpush1.bf16.msra.mxu0 %v476
  %625 = vmatprep.subr.bf16.mxu0 0
  %626 = vmatpush1.bf16.msra.mxu0 %v475
  %627 = vmatprep.subr.bf16.mxu0 0
  %628 = vmatpush1.bf16.msra.mxu0 %v474
  %629 = vmatprep.subr.bf16.mxu0 0
  %630 = vmatpush1.bf16.msra.mxu0 %v473
  %631 = vmatprep.subr.bf16.mxu0 0
  %632 = vmatpush1.bf16.msra.mxu0 %v472
  %633 = vmatprep.subr.bf16.mxu0 0
  %634 = vmatpush2.bf16.msra.mxu0 %v487
  %635 = vmatprep.subr.bf16.mxu0 0
  %636 = vmatpush2.bf16.msra.mxu0 %v486
  %637 = vmatprep.subr.bf16.mxu0 0
  %638 = vmatpush2.bf16.msra.mxu0 %v485
  %639 = vmatprep.subr.bf16.mxu0 0
  %640 = vmatpush2.bf16.msra.mxu0 %v484
  %641 = vmatprep.subr.bf16.mxu0 0
  %642 = vmatpush2.bf16.msra.mxu0 %v483
  %643 = vmatprep.subr.bf16.mxu0 0
  %644 = vmatpush2.bf16.msra.mxu0 %v482
  %645 = vmatprep.subr.bf16.mxu0 0
  %646 = vmatpush2.bf16.msra.mxu0 %v481
  %647 = vmatprep.subr.bf16.mxu0 0
  %648 = vmatpush2.bf16.msra.mxu0 %v480
  %649 = vmatprep.mubr.bf16.mxu0 %v219
  %650 = vmatmul.mubr.bf16.gmra.mxu0 %v218
  %v651 = vpop.f32.mrf.mxu0
  %v652 = vadd.f32 %v587, %v651
  %v653 = vpop.f32.mrf.mxu0
  %v654 = vpop.f32.mrf.mxu0
  %v655 = vadd.f32 %v590, %v654
  %v656 = vpop.f32.mrf.mxu0
  %657 = vmatprep.mubr.bf16.mxu0 %v225
  %658 = vmatmul.mubr.bf16.gmra.mxu0 %v224
  %v659 = vpop.f32.mrf.mxu0
  %v660 = vadd.f32 %v595, %v659
  %v661 = vpop.f32.mrf.mxu0
  %v662 = vpop.f32.mrf.mxu0
  %v663 = vadd.f32 %v598, %v662
  %v664 = vpop.f32.mrf.mxu0
  %665 = vmatprep.mubr.bf16.mxu0 %v231
  %666 = vmatmul.mubr.bf16.gmra.mxu0 %v230
  %v667 = vpop.f32.mrf.mxu0
  %v668 = vadd.f32 %v603, %v667
  %v669 = vpop.f32.mrf.mxu0
  %v670 = vpop.f32.mrf.mxu0
  %v671 = vadd.f32 %v606, %v670
  %v672 = vpop.f32.mrf.mxu0
  %673 = vmatprep.mubr.bf16.mxu0 %v237
  %674 = vmatmul.mubr.bf16.gmra.mxu0 %v236
  %v675 = vpop.f32.mrf.mxu0
  %v676 = vadd.f32 %v611, %v675
  %v677 = vpop.f32.mrf.mxu0
  %v678 = vpop.f32.mrf.mxu0
  %v679 = vadd.f32 %v614, %v678
  %v680 = vpop.f32.mrf.mxu0
  %681 = vdwg.mxu0
  %682 = vmatprep.subr.bf16.mxu0 0
  %683 = vmatpush1.bf16.msra.mxu0 %v495
  %684 = vmatprep.subr.bf16.mxu0 0
  %685 = vmatpush1.bf16.msra.mxu0 %v494
  %686 = vmatprep.subr.bf16.mxu0 0
  %687 = vmatpush1.bf16.msra.mxu0 %v493
  %688 = vmatprep.subr.bf16.mxu0 0
  %689 = vmatpush1.bf16.msra.mxu0 %v492
  %690 = vmatprep.subr.bf16.mxu0 0
  %691 = vmatpush1.bf16.msra.mxu0 %v491
  %692 = vmatprep.subr.bf16.mxu0 0
  %693 = vmatpush1.bf16.msra.mxu0 %v490
  %694 = vmatprep.subr.bf16.mxu0 0
  %695 = vmatpush1.bf16.msra.mxu0 %v489
  %696 = vmatprep.subr.bf16.mxu0 0
  %697 = vmatpush1.bf16.msra.mxu0 %v488
  %698 = vmatprep.subr.bf16.mxu0 0
  %699 = vmatpush2.bf16.msra.mxu0 %v503
  %700 = vmatprep.subr.bf16.mxu0 0
  %701 = vmatpush2.bf16.msra.mxu0 %v502
  %702 = vmatprep.subr.bf16.mxu0 0
  %703 = vmatpush2.bf16.msra.mxu0 %v501
  %704 = vmatprep.subr.bf16.mxu0 0
  %705 = vmatpush2.bf16.msra.mxu0 %v500
  %706 = vmatprep.subr.bf16.mxu0 0
  %707 = vmatpush2.bf16.msra.mxu0 %v499
  %708 = vmatprep.subr.bf16.mxu0 0
  %709 = vmatpush2.bf16.msra.mxu0 %v498
  %710 = vmatprep.subr.bf16.mxu0 0
  %711 = vmatpush2.bf16.msra.mxu0 %v497
  %712 = vmatprep.subr.bf16.mxu0 0
  %713 = vmatpush2.bf16.msra.mxu0 %v496
  %714 = vmatprep.mubr.bf16.mxu0 %v221
  %715 = vmatmul.mubr.bf16.gmra.mxu0 %v220
  %v716 = vpop.f32.mrf.mxu0
  %v717 = vadd.f32 %v652, %v716
  %v718 = vpop.f32.mrf.mxu0
  %v719 = vpop.f32.mrf.mxu0
  %v720 = vadd.f32 %v655, %v719
  %v721 = vpop.f32.mrf.mxu0
  %722 = vmatprep.mubr.bf16.mxu0 %v227
  %723 = vmatmul.mubr.bf16.gmra.mxu0 %v226
  %v724 = vpop.f32.mrf.mxu0
  %v725 = vadd.f32 %v660, %v724
  %v726 = vpop.f32.mrf.mxu0
  %v727 = vpop.f32.mrf.mxu0
  %v728 = vadd.f32 %v663, %v727
  %v729 = vpop.f32.mrf.mxu0
  %730 = vmatprep.mubr.bf16.mxu0 %v233
  %731 = vmatmul.mubr.bf16.gmra.mxu0 %v232
  %v732 = vpop.f32.mrf.mxu0
  %v733 = vadd.f32 %v668, %v732
  %v734 = vpop.f32.mrf.mxu0
  %v735 = vpop.f32.mrf.mxu0
  %v736 = vadd.f32 %v671, %v735
  %v737 = vpop.f32.mrf.mxu0
  %738 = vmatprep.mubr.bf16.mxu0 %v239
  %739 = vmatmul.mubr.bf16.gmra.mxu0 %v238
  %v740 = vpop.f32.mrf.mxu0
  %v741 = vadd.f32 %v676, %v740
  %v742 = vpop.f32.mrf.mxu0
  %v743 = vpop.f32.mrf.mxu0
  %v744 = vadd.f32 %v679, %v743
  %v745 = vpop.f32.mrf.mxu0
  %746 = vdwg.mxu0
  %v747 = vld [vmem:[%s0] sm:$0xf]
  %v748 = vld [vmem:[%s0 + $0x4] sm:$0xf]
  %v749 = vld [vmem:[%s0 + $0x8] sm:$0xf]
  %v750 = vld [vmem:[%s0 + $0xc] sm:$0xf]
  %v751 = vld [vmem:[%s0 + $0x10] sm:$0xf]
  %v752 = vld [vmem:[%s0 + $0x14] sm:$0xf]
  %v753 = vld [vmem:[%s0 + $0x18] sm:$0xf]
  %v754 = vld [vmem:[%s0 + $0x1c] sm:$0xf]
  %v755 = vpack.c.bf16 %v720, %v717
  %v756 = vpack.c.bf16 %v728, %v725
  %v757 = vpack.c.bf16 %v736, %v733
  %v758 = vpack.c.bf16 %v744, %v741
  %v759 = vld [vmem:[%s3] sm:$0x1]
  %v761 = vlaneseq
  %v762 = vshrl.u32 %v761, 7
  %v763 = vsub.s32 0, %v762
  %v764 = vrot.slane %v759, %v763
  %v774 = vunpack.c.l.b16 %v747
  %v775 = vunpack.c.l.b16 %v748
  %v776 = vunpack.c.l.b16 %v749
  %v777 = vunpack.c.l.b16 %v750
  %v778 = vunpack.c.l.b16 %v751
  %v779 = vunpack.c.l.b16 %v752
  %v780 = vunpack.c.l.b16 %v753
  %v781 = vunpack.c.l.b16 %v754
  %v782 = vpack.c.b16 %v775, %v774
  %v783 = vpack.c.b16 %v777, %v776
  %v784 = vpack.c.b16 %v779, %v778
  %v785 = vpack.c.b16 %v781, %v780
  %vm786 = vcmask 523264
  %v788 = vsel %vm786, %v782, 0
  %v791 = vsel %vm786, %v783, 0
  %v794 = vsel %vm786, %v784, 0
  %v797 = vsel %vm786, %v785, 0
  %799 = vmatprep.subr.bf16.mxu0 0
  %800 = vmatpush1.bf16.msra.mxu0 0
  %801 = vmatprep.subr.bf16.mxu0 0
  %802 = vmatpush1.bf16.msra.mxu0 0
  %803 = vmatprep.subr.bf16.mxu0 0
  %804 = vmatpush1.bf16.msra.mxu0 0
  %805 = vmatprep.subr.bf16.mxu0 0
  %806 = vmatpush1.bf16.msra.mxu0 0
  %807 = vmatprep.subr.bf16.mxu0 0
  %808 = vmatpush1.bf16.msra.mxu0 %v758
  %809 = vmatprep.subr.bf16.mxu0 0
  %810 = vmatpush1.bf16.msra.mxu0 %v757
  %811 = vmatprep.subr.bf16.mxu0 0
  %812 = vmatpush1.bf16.msra.mxu0 %v756
  %813 = vmatprep.subr.bf16.mxu0 0
  %814 = vmatpush1.bf16.msra.mxu0 %v755
  %815 = vmatprep.subr.bf16.mxu0 0
  %816 = vmatpush2.bf16.msra.mxu0 0
  %817 = vmatprep.subr.bf16.mxu0 0
  %818 = vmatpush2.bf16.msra.mxu0 0
  %819 = vmatprep.subr.bf16.mxu0 0
  %820 = vmatpush2.bf16.msra.mxu0 0
  %821 = vmatprep.subr.bf16.mxu0 0
  %822 = vmatpush2.bf16.msra.mxu0 0
  %823 = vmatprep.subr.bf16.mxu0 0
  %824 = vmatpush2.bf16.msra.mxu0 0
  %825 = vmatprep.subr.bf16.mxu0 0
  %826 = vmatpush2.bf16.msra.mxu0 0
  %827 = vmatprep.subr.bf16.mxu0 0
  %828 = vmatpush2.bf16.msra.mxu0 0
  %829 = vmatprep.subr.bf16.mxu0 0
  %830 = vmatpush2.bf16.msra.mxu0 0
  %831 = vmatprep.mubr.bf16.mxu0 0
  %832 = vmatmul.mubr.bf16.gmra.mxu0 %v788
  %v833 = vpop.f32.mrf.mxu0
  %v834 = vadd.f32 %v764, %v833
  %v835 = vpop.f32.mrf.mxu0
  %v836 = vpop.f32.mrf.mxu0
  %v837 = vadd.f32 %v764, %v836
  %v838 = vpop.f32.mrf.mxu0
  %839 = vmatprep.mubr.bf16.mxu0 0
  %840 = vmatmul.mubr.bf16.gmra.mxu0 %v791
  %v841 = vpop.f32.mrf.mxu0
  %v842 = vadd.f32 %v764, %v841
  %v843 = vpop.f32.mrf.mxu0
  %v844 = vpop.f32.mrf.mxu0
  %v845 = vadd.f32 %v764, %v844
  %v846 = vpop.f32.mrf.mxu0
  %847 = vmatprep.mubr.bf16.mxu0 0
  %848 = vmatmul.mubr.bf16.gmra.mxu0 %v794
  %v849 = vpop.f32.mrf.mxu0
  %v850 = vadd.f32 %v764, %v849
  %v851 = vpop.f32.mrf.mxu0
  %v852 = vpop.f32.mrf.mxu0
  %v853 = vadd.f32 %v764, %v852
  %v854 = vpop.f32.mrf.mxu0
  %855 = vmatprep.mubr.bf16.mxu0 0
  %856 = vmatmul.mubr.bf16.gmra.mxu0 %v797
  %v857 = vpop.f32.mrf.mxu0
  %v858 = vadd.f32 %v764, %v857
  %v859 = vpop.f32.mrf.mxu0
  %v860 = vpop.f32.mrf.mxu0
  %v861 = vadd.f32 %v764, %v860
  %v862 = vpop.f32.mrf.mxu0
  %863 = vdwg.mxu0
  %v864 = vmax.f32 %v834, 0.0
  %v865 = vmax.f32 %v837, 0.0
  %v866 = vmax.f32 %v842, 0.0
  %v867 = vmax.f32 %v845, 0.0
  %v868 = vmax.f32 %v850, 0.0
  %v869 = vmax.f32 %v853, 0.0
  %v870 = vmax.f32 %v858, 0.0
  %v871 = vmax.f32 %v861, 0.0
  %v872 = vpack.c.bf16 %v865, %v864
  %v873 = vpack.c.bf16 %v867, %v866
  %v874 = vpack.c.bf16 %v869, %v868
  %v875 = vpack.c.bf16 %v871, %v870
  %v876 = vld [vmem:[%s4] sm:$0xf]
  %v877 = vld [vmem:[%s4 + $0x4] sm:$0xf]
  %v878 = vld [vmem:[%s4 + $0x8] sm:$0xf]
  %v879 = vld [vmem:[%s4 + $0xc] sm:$0xf]
  %v880 = vld [vmem:[%s4 + $0x10] sm:$0xf]
  %v881 = vld [vmem:[%s4 + $0x14] sm:$0xf]
  %v882 = vld [vmem:[%s4 + $0x18] sm:$0xf]
  %v883 = vld [vmem:[%s4 + $0x1c] sm:$0xf]
  %v884 = vld [vmem:[%s4 + $0x20] sm:$0xf]
  %v885 = vld [vmem:[%s4 + $0x24] sm:$0xf]
  %v886 = vld [vmem:[%s4 + $0x28] sm:$0xf]
  %v887 = vld [vmem:[%s4 + $0x2c] sm:$0xf]
  %v888 = vld [vmem:[%s4 + $0x30] sm:$0xf]
  %v889 = vld [vmem:[%s4 + $0x34] sm:$0xf]
  %v890 = vld [vmem:[%s4 + $0x38] sm:$0xf]
  %v891 = vld [vmem:[%s4 + $0x3c] sm:$0xf]
  %v908 = vunpack.c.l.b16 %v876
  %v909 = vunpack.c.l.b16 %v877
  %v910 = vunpack.c.l.b16 %v878
  %v911 = vunpack.c.l.b16 %v879
  %v912 = vunpack.c.l.b16 %v880
  %v913 = vunpack.c.l.b16 %v881
  %v914 = vunpack.c.l.b16 %v882
  %v915 = vunpack.c.l.b16 %v883
  %v916 = vunpack.c.l.b16 %v884
  %v917 = vunpack.c.l.b16 %v885
  %v918 = vunpack.c.l.b16 %v886
  %v919 = vunpack.c.l.b16 %v887
  %v920 = vunpack.c.l.b16 %v888
  %v921 = vunpack.c.l.b16 %v889
  %v922 = vunpack.c.l.b16 %v890
  %v923 = vunpack.c.l.b16 %v891
  %v924 = vpack.c.b16 %v909, %v908
  %v925 = vpack.c.b16 %v911, %v910
  %v926 = vpack.c.b16 %v913, %v912
  %v927 = vpack.c.b16 %v915, %v914
  %v928 = vpack.c.b16 %v917, %v916
  %v929 = vpack.c.b16 %v919, %v918
  %v930 = vpack.c.b16 %v921, %v920
  %v931 = vpack.c.b16 %v923, %v922
  %940 = vmatprep.subr.bf16.mxu0 0
  %941 = vmatpush1.bf16.msra.mxu0 %v931
  %942 = vmatprep.subr.bf16.mxu0 0
  %943 = vmatpush1.bf16.msra.mxu0 %v930
  %944 = vmatprep.subr.bf16.mxu0 0
  %945 = vmatpush1.bf16.msra.mxu0 %v929
  %946 = vmatprep.subr.bf16.mxu0 0
  %947 = vmatpush1.bf16.msra.mxu0 %v928
  %948 = vmatprep.subr.bf16.mxu0 0
  %949 = vmatpush1.bf16.msra.mxu0 %v927
  %950 = vmatprep.subr.bf16.mxu0 0
  %951 = vmatpush1.bf16.msra.mxu0 %v926
  %952 = vmatprep.subr.bf16.mxu0 0
  %953 = vmatpush1.bf16.msra.mxu0 %v925
  %954 = vmatprep.subr.bf16.mxu0 0
  %955 = vmatpush1.bf16.msra.mxu0 %v924
  %956 = vmatprep.subr.bf16.mxu0 0
  %957 = vmatpush2.bf16.msra.mxu0 0
  %958 = vmatprep.subr.bf16.mxu0 0
  %959 = vmatpush2.bf16.msra.mxu0 0
  %960 = vmatprep.subr.bf16.mxu0 0
  %961 = vmatpush2.bf16.msra.mxu0 0
  %962 = vmatprep.subr.bf16.mxu0 0
  %963 = vmatpush2.bf16.msra.mxu0 0
  %964 = vmatprep.subr.bf16.mxu0 0
  %965 = vmatpush2.bf16.msra.mxu0 0
  %966 = vmatprep.subr.bf16.mxu0 0
  %967 = vmatpush2.bf16.msra.mxu0 0
  %968 = vmatprep.subr.bf16.mxu0 0
  %969 = vmatpush2.bf16.msra.mxu0 0
  %970 = vmatprep.subr.bf16.mxu0 0
  %971 = vmatpush2.bf16.msra.mxu0 0
  %972 = vmatprep.mubr.bf16.mxu0 0
  %973 = vmatmul.mubr.bf16.gmra.mxu0 %v872
  %v974 = vpop.f32.mrf.mxu0
  %v975 = vadd.f32 0.0, %v974
  %v976 = vpop.f32.mrf.mxu0
  %v977 = vpop.f32.mrf.mxu0
  %v978 = vadd.f32 0.0, %v977
  %v979 = vpop.f32.mrf.mxu0
  %980 = vmatprep.mubr.bf16.mxu0 0
  %981 = vmatmul.mubr.bf16.gmra.mxu0 %v873
  %v982 = vpop.f32.mrf.mxu0
  %v983 = vadd.f32 0.0, %v982
  %v984 = vpop.f32.mrf.mxu0
  %v985 = vpop.f32.mrf.mxu0
  %v986 = vadd.f32 0.0, %v985
  %v987 = vpop.f32.mrf.mxu0
  %988 = vmatprep.mubr.bf16.mxu0 0
  %989 = vmatmul.mubr.bf16.gmra.mxu0 %v874
  %v990 = vpop.f32.mrf.mxu0
  %v991 = vadd.f32 0.0, %v990
  %v992 = vpop.f32.mrf.mxu0
  %v993 = vpop.f32.mrf.mxu0
  %v994 = vadd.f32 0.0, %v993
  %v995 = vpop.f32.mrf.mxu0
  %996 = vmatprep.mubr.bf16.mxu0 0
  %997 = vmatmul.mubr.bf16.gmra.mxu0 %v875
  %v998 = vpop.f32.mrf.mxu0
  %v999 = vadd.f32 0.0, %v998
  %v1000 = vpop.f32.mrf.mxu0
  %v1001 = vpop.f32.mrf.mxu0
  %v1002 = vadd.f32 0.0, %v1001
  %v1003 = vpop.f32.mrf.mxu0
  %1004 = vdwg.mxu0
  %v1005 = vpack.c.bf16 %v978, %v975
  %v1006 = vpack.c.bf16 %v986, %v983
  %v1007 = vpack.c.bf16 %v994, %v991
  %v1008 = vpack.c.bf16 %v1002, %v999
  %v1009 = vld [vmem:[%s5] sm:$0x1]
  %v1011 = vlaneseq
  %v1012 = vshrl.u32 %v1011, 7
  %v1013 = vsub.s32 0, %v1012
  %v1014 = vrot.slane %v1009, %v1013
  %1016 = vmatprep.subr.bf16.mxu0 0
  %1017 = vmatpush1.bf16.msra.mxu0 0
  %1018 = vmatprep.subr.bf16.mxu0 0
  %1019 = vmatpush1.bf16.msra.mxu0 0
  %1020 = vmatprep.subr.bf16.mxu0 0
  %1021 = vmatpush1.bf16.msra.mxu0 0
  %1022 = vmatprep.subr.bf16.mxu0 0
  %1023 = vmatpush1.bf16.msra.mxu0 0
  %1024 = vmatprep.subr.bf16.mxu0 0
  %1025 = vmatpush1.bf16.msra.mxu0 %v1008
  %1026 = vmatprep.subr.bf16.mxu0 0
  %1027 = vmatpush1.bf16.msra.mxu0 %v1007
  %1028 = vmatprep.subr.bf16.mxu0 0
  %1029 = vmatpush1.bf16.msra.mxu0 %v1006
  %1030 = vmatprep.subr.bf16.mxu0 0
  %1031 = vmatpush1.bf16.msra.mxu0 %v1005
  %1032 = vmatprep.subr.bf16.mxu0 0
  %1033 = vmatpush2.bf16.msra.mxu0 0
  %1034 = vmatprep.subr.bf16.mxu0 0
  %1035 = vmatpush2.bf16.msra.mxu0 0
  %1036 = vmatprep.subr.bf16.mxu0 0
  %1037 = vmatpush2.bf16.msra.mxu0 0
  %1038 = vmatprep.subr.bf16.mxu0 0
  %1039 = vmatpush2.bf16.msra.mxu0 0
  %1040 = vmatprep.subr.bf16.mxu0 0
  %1041 = vmatpush2.bf16.msra.mxu0 0
  %1042 = vmatprep.subr.bf16.mxu0 0
  %1043 = vmatpush2.bf16.msra.mxu0 0
  %1044 = vmatprep.subr.bf16.mxu0 0
  %1045 = vmatpush2.bf16.msra.mxu0 0
  %1046 = vmatprep.subr.bf16.mxu0 0
  %1047 = vmatpush2.bf16.msra.mxu0 0
  %1048 = vmatprep.mubr.bf16.mxu0 0
  %1049 = vmatmul.mubr.bf16.gmra.mxu0 %v788
  %v1050 = vpop.f32.mrf.mxu0
  %v1051 = vadd.f32 %v1014, %v1050
  %v1052 = vpop.f32.mrf.mxu0
  %v1053 = vpop.f32.mrf.mxu0
  %v1054 = vadd.f32 %v1014, %v1053
  %v1055 = vpop.f32.mrf.mxu0
  %1056 = vmatprep.mubr.bf16.mxu0 0
  %1057 = vmatmul.mubr.bf16.gmra.mxu0 %v791
  %v1058 = vpop.f32.mrf.mxu0
  %v1059 = vadd.f32 %v1014, %v1058
  %v1060 = vpop.f32.mrf.mxu0
  %v1061 = vpop.f32.mrf.mxu0
  %v1062 = vadd.f32 %v1014, %v1061
  %v1063 = vpop.f32.mrf.mxu0
  %1064 = vmatprep.mubr.bf16.mxu0 0
  %1065 = vmatmul.mubr.bf16.gmra.mxu0 %v794
  %v1066 = vpop.f32.mrf.mxu0
  %v1067 = vadd.f32 %v1014, %v1066
  %v1068 = vpop.f32.mrf.mxu0
  %v1069 = vpop.f32.mrf.mxu0
  %v1070 = vadd.f32 %v1014, %v1069
  %v1071 = vpop.f32.mrf.mxu0
  %1072 = vmatprep.mubr.bf16.mxu0 0
  %1073 = vmatmul.mubr.bf16.gmra.mxu0 %v797
  %v1074 = vpop.f32.mrf.mxu0
  %v1075 = vadd.f32 %v1014, %v1074
  %v1076 = vpop.f32.mrf.mxu0
  %v1077 = vpop.f32.mrf.mxu0
  %v1078 = vadd.f32 %v1014, %v1077
  %v1079 = vpop.f32.mrf.mxu0
  %1080 = vdwg.mxu0
  %v1081 = vlaneseq
  %v1082 = vand.u32 %v1081, 127
  %vm1083 = vcmp.lt.s32.totalorder %v1082, 5
  %v1084 = vsel %vm1083, %v1051, -inf
  %v1085 = vsel %vm1083, %v1054, -inf
  %v1086 = vsel %vm1083, %v1059, -inf
  %v1087 = vsel %vm1083, %v1062, -inf
  %v1088 = vsel %vm1083, %v1067, -inf
  %v1089 = vsel %vm1083, %v1070, -inf
  %v1090 = vsel %vm1083, %v1075, -inf
  %v1091 = vsel %vm1083, %v1078, -inf
  %1092 = vmax.xlane.f32.xlu0 %v1084
  %v1093 = vpop.xlane.xlu0 %1092
  %1094 = vmax.xlane.f32.xlu0 %v1085
  %v1095 = vpop.xlane.xlu0 %1094
  %1096 = vmax.xlane.f32.xlu0 %v1086
  %v1097 = vpop.xlane.xlu0 %1096
  %1098 = vmax.xlane.f32.xlu0 %v1087
  %v1099 = vpop.xlane.xlu0 %1098
  %1100 = vmax.xlane.f32.xlu0 %v1088
  %v1101 = vpop.xlane.xlu0 %1100
  %1102 = vmax.xlane.f32.xlu0 %v1089
  %v1103 = vpop.xlane.xlu0 %1102
  %1104 = vmax.xlane.f32.xlu0 %v1090
  %v1105 = vpop.xlane.xlu0 %1104
  %1106 = vmax.xlane.f32.xlu0 %v1091
  %v1107 = vpop.xlane.xlu0 %1106
  %v1108 = vsub.f32 %v1084, %v1093
  %v1109 = vsub.f32 %v1085, %v1095
  %v1110 = vsub.f32 %v1086, %v1097
  %v1111 = vsub.f32 %v1087, %v1099
  %v1112 = vsub.f32 %v1088, %v1101
  %v1113 = vsub.f32 %v1089, %v1103
  %v1114 = vsub.f32 %v1090, %v1105
  %v1115 = vsub.f32 %v1091, %v1107
  %v1116 = vmul.f32 %v1108, 1.442695
  %v1117 = vpow.pop %v1116
  %v1118 = vmul.f32 %v1109, 1.442695
  %v1119 = vpow.pop %v1118
  %v1120 = vmul.f32 %v1110, 1.442695
  %v1121 = vpow.pop %v1120
  %v1122 = vmul.f32 %v1111, 1.442695
  %v1123 = vpow.pop %v1122
  %v1124 = vmul.f32 %v1112, 1.442695
  %v1125 = vpow.pop %v1124
  %v1126 = vmul.f32 %v1113, 1.442695
  %v1127 = vpow.pop %v1126
  %v1128 = vmul.f32 %v1114, 1.442695
  %v1129 = vpow.pop %v1128
  %v1130 = vmul.f32 %v1115, 1.442695
  %v1131 = vpow.pop %v1130
  %1132 = vadd.xlane.f32.xlu0 %v1117
  %v1133 = vpop.xlane.xlu0 %1132
  %1134 = vadd.xlane.f32.xlu0 %v1119
  %v1135 = vpop.xlane.xlu0 %1134
  %1136 = vadd.xlane.f32.xlu0 %v1121
  %v1137 = vpop.xlane.xlu0 %1136
  %1138 = vadd.xlane.f32.xlu0 %v1123
  %v1139 = vpop.xlane.xlu0 %1138
  %1140 = vadd.xlane.f32.xlu0 %v1125
  %v1141 = vpop.xlane.xlu0 %1140
  %1142 = vadd.xlane.f32.xlu0 %v1127
  %v1143 = vpop.xlane.xlu0 %1142
  %1144 = vadd.xlane.f32.xlu0 %v1129
  %v1145 = vpop.xlane.xlu0 %1144
  %1146 = vadd.xlane.f32.xlu0 %v1131
  %v1147 = vpop.xlane.xlu0 %1146
  %v1148 = vlog2.pop %v1133
  %v1149 = vmul.f32 %v1148, 0.6931472
  %v1150 = vlog2.pop %v1135
  %v1151 = vmul.f32 %v1150, 0.6931472
  %v1152 = vlog2.pop %v1137
  %v1153 = vmul.f32 %v1152, 0.6931472
  %v1154 = vlog2.pop %v1139
  %v1155 = vmul.f32 %v1154, 0.6931472
  %v1156 = vlog2.pop %v1141
  %v1157 = vmul.f32 %v1156, 0.6931472
  %v1158 = vlog2.pop %v1143
  %v1159 = vmul.f32 %v1158, 0.6931472
  %v1160 = vlog2.pop %v1145
  %v1161 = vmul.f32 %v1160, 0.6931472
  %v1162 = vlog2.pop %v1147
  %v1163 = vmul.f32 %v1162, 0.6931472
  %v1164 = vadd.f32 %v1149, %v1093
  %v1165 = vadd.f32 %v1151, %v1095
  %v1166 = vadd.f32 %v1153, %v1097
  %v1167 = vadd.f32 %v1155, %v1099
  %v1168 = vadd.f32 %v1157, %v1101
  %v1169 = vadd.f32 %v1159, %v1103
  %v1170 = vadd.f32 %v1161, %v1105
  %v1171 = vadd.f32 %v1163, %v1107
  %v1172 = vsub.f32 %v1084, %v1164
  %v1173 = vsub.f32 %v1085, %v1165
  %v1174 = vsub.f32 %v1086, %v1166
  %v1175 = vsub.f32 %v1087, %v1167
  %v1176 = vsub.f32 %v1088, %v1168
  %v1177 = vsub.f32 %v1089, %v1169
  %v1178 = vsub.f32 %v1090, %v1170
  %v1179 = vsub.f32 %v1091, %v1171
  %1180 = vst [vmem:[%s6] sm:$0xff] %v1172
  %1181 = vst [vmem:[%s6 + $0x8] sm:$0xff] %v1173
  %1182 = vst [vmem:[%s6 + $0x10] sm:$0xff] %v1174
  %1183 = vst [vmem:[%s6 + $0x18] sm:$0xff] %v1175
  %1184 = vst [vmem:[%s6 + $0x20] sm:$0xff] %v1176
  %1185 = vst [vmem:[%s6 + $0x28] sm:$0xff] %v1177
  %1186 = vst [vmem:[%s6 + $0x30] sm:$0xff] %v1178
  %1187 = vst [vmem:[%s6 + $0x38] sm:$0xff] %v1179
  // Predicated region
  $region26: #{gcn_forward.1} parent=0 // pred_check
    _
  $region27: #{gcn_forward.1} parent=0 // pred_check_branch
    %1189 = sbr.rel (0) target = $region29
  $region28: #{gcn_forward.1} parent=0 // pred_region
    _
  $region29: #{gcn_forward.1} parent=0 // pred_fallthru
    _
  // Predicated region
  $region30: #{gcn_forward.1} parent=0 // pred_check
    _
  $region31: #{gcn_forward.1} parent=0 // pred_check_branch
    %1191 = sbr.rel (0) target = $region33
  $region32: #{gcn_forward.1} parent=0 // pred_region
    _
  $region33: #{gcn_forward.1} parent=0 // pred_fallthru
    _

</llo_original>
